<compile_context>
chip_gen: v6e
topology: v6e:2x2x1
jax: 0.10.0
libtpu: 0.0.40
codegen_flags: <defaults>
</compile_context>

<pallas_src>
import functools

import jax
import jax.numpy as jnp
from jax.experimental import pallas as pl
from jax.experimental.pallas import tpu as pltpu


def _gmof_kernel(x_ref, o_ref, *, rho2):
    # x_ref / o_ref: (block_rows, block_lanes) VMEM tiles. rho2 is baked in at
    # trace time. Op order matches the reference: sq/(sq+rho2), then * rho2.
    x = x_ref[...].astype(jnp.float32)
    sq = x * x
    dist = sq / (sq + rho2)
    o_ref[...] = (rho2 * dist).astype(o_ref.dtype)


def _sublane_multiple(dtype) -> int:
    """Packed-sublane count: 8 for 32-bit, 16 for 16-bit, 32 for 8-bit dtypes."""
    itemsize = jnp.dtype(dtype).itemsize
    return 8 * max(1, 4 // max(1, itemsize))


def _pick_blocks(rows, lanes, itemsize, sub_mult):
    """~2 MiB blocks, sublane-rounded, with an even row-grid step count."""
    target = 2 << 20

    # Lane block: full lane extent unless even a minimal-height slab would
    # overshoot the target (very wide trailing dims) -> then tile lanes too.
    if lanes * sub_mult * itemsize <= target:
        block_lanes = lanes
    else:
        block_lanes = max(128, (target // (sub_mult * itemsize)) // 128 * 128)

    # Row block: fill up to ~target bytes, rounded to the packed-sublane count.
    block_rows = max(sub_mult,
                     (target // (block_lanes * itemsize)) // sub_mult * sub_mult)
    if block_rows >= rows:
        block_rows = rows                      # full-dim block: always legal
    else:
        # Prefer an even number of row-grid steps (v7x two-TC balance).
        n_steps = pl.cdiv(rows, block_rows)
        if n_steps > 1 and n_steps % 2 == 1:
            n_steps += 1
            block_rows = max(sub_mult,
                             pl.cdiv(pl.cdiv(rows, n_steps), sub_mult) * sub_mult)
    return block_rows, block_lanes


def _gmof_xla(residual, rho2, dtype):
    sq = residual.astype(jnp.float32) ** 2
    dist = sq / (sq + rho2)
    return (rho2 * dist).astype(dtype)


def _gmof_pallas_2d(x2d, rho2, dtype):
    rows, lanes = x2d.shape
    itemsize = jnp.dtype(dtype).itemsize
    sub_mult = _sublane_multiple(dtype)
    block_rows, block_lanes = _pick_blocks(rows, lanes, itemsize, sub_mult)
    grid = (pl.cdiv(rows, block_rows), pl.cdiv(lanes, block_lanes))

    return pl.pallas_call(
        functools.partial(_gmof_kernel, rho2=rho2),
        out_shape=jax.ShapeDtypeStruct((rows, lanes), dtype),
        grid_spec=pltpu.PrefetchScalarGridSpec(
            num_scalar_prefetch=0,
            grid=grid,
            in_specs=[pl.BlockSpec((block_rows, block_lanes),
                                   lambda i, j: (i, j))],
            out_specs=pl.BlockSpec((block_rows, block_lanes),
                                   lambda i, j: (i, j)),
        ),
        compiler_params=pltpu.CompilerParams(
            dimension_semantics=("parallel", "parallel"),
            vmem_limit_bytes=32 << 20,   # headroom; safe on v5e/v6e/v7x
        ),
    )(x2d)


def gmof(residual: jax.Array, rho: float = 1.0, *,
         min_pallas_elems: int = 1 << 16) -> jax.Array:
    """GMoF robust error, matching the PyTorch module semantics."""
    orig_shape = residual.shape
    dtype = residual.dtype
    rho2 = float(rho) * float(rho)
    n = residual.size

    if n == 0:
        return residual

    if n < min_pallas_elems:
        # Tiny tensors: launch + layout plumbing dwarf the compute.
        return _gmof_xla(residual, rho2, dtype)

    last = orig_shape[-1] if len(orig_shape) >= 1 else n

    # Path A (zero extra HBM traffic): trailing dim already lane-aligned.
    # Collapsing leading dims keeps the (8,128) minor layout -> free reshape.
    if last >= 128 and last % 128 == 0:
        out2d = _gmof_pallas_2d(residual.reshape(-1, last), rho2, dtype)
        return out2d.reshape(orig_shape)

    # Path B: trailing dim small/unaligned. Re-lane to the widest 128-multiple
    # that divides the flat size exactly (one unavoidable relayout copy, but no
    # host-side pad and no tail stitching).
    for lanes in (4096, 2048, 1024, 512, 256, 128):
        if n % lanes == 0:
            out2d = _gmof_pallas_2d(residual.reshape(-1, lanes), rho2, dtype)
            return out2d.reshape(orig_shape)

    # Path C: flat size not 128-aligned. Any pad / prefix+tail stitch adds a
    # full-tensor HBM copy, which costs more than Pallas saves for a purely
    # bandwidth-bound elementwise op -> use XLA's fused elementwise instead.
    return _gmof_xla(residual, rho2, dtype)


def gmof_reference(residual: jax.Array, rho: float = 1.0) -> jax.Array:
    squared_res = residual ** 2
    dist = squared_res / (squared_res + rho ** 2)
    return (rho ** 2) * dist


if __name__ == "__main__":
    key = jax.random.PRNGKey(0)
    rho = 1.0

    # Small NCHW-like residual tensor (module spec shape); trailing dim 16 is
    # unaligned -> exercises the re-lane Pallas path. Force Pallas at this size.
    x = jax.random.normal(key, (2, 4, 16, 16), dtype=jnp.float32) * 3.0
    out = jax.block_until_ready(gmof(x, rho=rho, min_pallas_elems=0))
    ref = gmof_reference(x, rho=rho)
    assert out.shape == x.shape and out.dtype == x.dtype
    assert jnp.allclose(out, ref, atol=1e-6, rtol=1e-6), "mismatch vs reference"

    # Also exercise the zero-copy path (trailing dim already a multiple of 128).
    x2 = jax.random.normal(jax.random.PRNGKey(1), (2, 8, 128), dtype=jnp.float32)
    out2 = jax.block_until_ready(gmof(x2, rho=0.5, min_pallas_elems=0))
    ref2 = gmof_reference(x2, rho=0.5)
    assert out2.shape == x2.shape and out2.dtype == x2.dtype
    assert jnp.allclose(out2, ref2, atol=1e-6, rtol=1e-6), "mismatch (aligned path)"

    print("KERNEL_OK")
</pallas_src>

<mosaic_0001>
module attributes {stable_mosaic.version = 11 : i64} {
  func.func @_gmof_kernel(%arg0: i32, %arg1: i32, %arg2: memref<1x2048xf32, #tpu.memory_space<vmem>>, %arg3: memref<1x2048xf32, #tpu.memory_space<vmem>>) attributes {dimension_semantics = [#tpu.dimension_semantics<parallel>, #tpu.dimension_semantics<parallel>], iteration_bounds = array<i64: 1, 1>, scalar_prefetch = 0 : i64, scratch_operands = 0 : i64, tpu.core_type = #tpu.core_type<tc>, window_params = [{transform_indices = @transform_0, window_bounds = array<i64: 1, 2048>}, {transform_indices = @transform_1, window_bounds = array<i64: 1, 2048>}]} {
    %c0 = arith.constant 0 : index
    %c0_0 = arith.constant 0 : index
    %0 = vector.load %arg2[%c0, %c0_0] : memref<1x2048xf32, #tpu.memory_space<vmem>>, vector<1x2048xf32>
    %1 = arith.mulf %0, %0 : vector<1x2048xf32>
    %cst = arith.constant 1.000000e+00 : f32
    %2 = vector.broadcast %cst : f32 to vector<1x2048xf32>
    %3 = arith.addf %1, %2 : vector<1x2048xf32>
    %4 = arith.divf %1, %3 : vector<1x2048xf32>
    %cst_1 = arith.constant 1.000000e+00 : f32
    %5 = vector.broadcast %cst_1 : f32 to vector<1x2048xf32>
    %6 = arith.mulf %5, %4 : vector<1x2048xf32>
    %c0_2 = arith.constant 0 : index
    %c0_3 = arith.constant 0 : index
    %7 = vector.load %arg3[%c0_2, %c0_3] : memref<1x2048xf32, #tpu.memory_space<vmem>>, vector<1x2048xf32>
    tpu.vector_store %arg3[%c0_2, %c0_3], %6 {strides = array<i32>} : memref<1x2048xf32, #tpu.memory_space<vmem>>, vector<1x2048xf32>,
    return
  }
  func.func @transform_0(%arg0: i32, %arg1: i32) -> (i32, i32) {
    %c0_i32 = arith.constant 0 : i32
    return %arg0, %arg1 : i32, i32
  }
  func.func @transform_1(%arg0: i32, %arg1: i32) -> (i32, i32) {
    %c0_i32 = arith.constant 0 : i32
    return %arg0, %arg1 : i32, i32
  }
}

</mosaic_0001>

<llo_original>
// kernel: tpu_custom_call.1
$region0: #{tpu_custom_call.1}
  #allocation0 [shape = 'u32[]', space=smem, size = 0x4, offset = 0x4, fixed_abs, tag = 'smem constant byte address 0x4 - core index']
  #allocation1 [shape = 'u32[144,128]{1,0:T(1,128)}', space=vmem, size = 0x12000, scoped, tag = 'internal scratch']
  %s0 = inlined_call_operand.hbm [shape: f32[1,2048], index: 0, kind: input, shape index: {}]
  %s1 = inlined_call_operand.hbm [shape: f32[1,2048], index: 1, kind: output, shape index: {}]
  %s2 = sld [smem:[#allocation0]]
  $region18: #{tpu_custom_call.1} parent=0
    _
  %s4 = ssub.s32 1, %s2
  %s5 = scalar_select 0, %s4, %s2
  $region1: #{tpu_custom_call.1} parent=0
    #allocation2 [shape = 'u8[8192]{0}', space=vmem, size = 0x2000, scoped, tag = 'input window, operand 0, single buffered']
    #allocation3 [shape = 's32[1]{0}', space=sflag, size = 0x4, scoped, tag = 'scoped memory for tpu_custom_call.1']
    #allocation4 [shape = 's32[1]{0}', space=sflag, size = 0x4, scoped, tag = 'scoped memory for tpu_custom_call.1']
    #allocation5 [shape = 'u8[8192]{0}', space=vmem, size = 0x2000, scoped, tag = 'output window, operand 0, single buffered']
    %6 = vsyncpa [#allocation3], 0
    %7 = vsyncpa [#allocation4], 0
    // Predicated region
    $region2: #{tpu_custom_call.1} parent=1 // pred_check
      _
    $region3: #{tpu_custom_call.1} parent=1 // pred_check_branch
      %9 = sbr.rel (0) target = $region5
    $region4: #{tpu_custom_call.1} parent=1 // pred_region
      %s11 = ssub.s32 256, 256
      %12 = vsyncadd [#allocation3], %s11
      %s14 = sshll.u32 [#allocation2], 4
      %s15 = int_to_ptr.vmem [resolvable:$true] %s14
      %17 = dma.hbm_to_vmem [thread:$0]  %s0, 256, %s15, [#allocation3]
    $region5: #{tpu_custom_call.1} parent=1 // pred_fallthru
      _
    // Predicated region
    $region6: #{tpu_custom_call.1} parent=1 // pred_check
      _
    $region7: #{tpu_custom_call.1} parent=1 // pred_check_branch
      %19 = sbr.rel (0) target = $region9
    $region8: #{tpu_custom_call.1} parent=1 // pred_region
      %20 = dma.done [#allocation3], 256
    $region9: #{tpu_custom_call.1} parent=1 // pred_fallthru
      _
    %v21 = vld [vmem:[#allocation2] sm:$0xff]
    %v22 = vld [vmem:[#allocation2 + $0x8] sm:$0xff]
    %v23 = vmul.f32 %v21, %v21
    %v24 = vmul.f32 %v22, %v22
    %v25 = vadd.f32 %v23, 1.0
    %v26 = vadd.f32 %v24, 1.0
    %v27 = vrcp.pop %v25
    %v28 = vmul.f32 %v23, %v27
    %v29 = vrcp.pop %v26
    %v30 = vmul.f32 %v24, %v29
    %31 = vst [vmem:[#allocation5] sm:$0xff] %v28
    %32 = vst [vmem:[#allocation5 + $0x8] sm:$0xff] %v30
    // Predicated region
    $region10: #{tpu_custom_call.1} parent=1 // pred_check
      _
    $region11: #{tpu_custom_call.1} parent=1 // pred_check_branch
      %34 = sbr.rel (0) target = $region13
    $region12: #{tpu_custom_call.1} parent=1 // pred_region
      %s36 = ssub.s32 256, 256
      %37 = vsyncadd [#allocation4], %s36
      %s39 = sshll.u32 [#allocation5], 4
      %s40 = int_to_ptr.vmem [resolvable:$true] %s39
      %42 = dma.vmem_to_hbm [thread:$0]  %s40, 256, %s1, [#allocation4]
    $region13: #{tpu_custom_call.1} parent=1 // pred_fallthru
      _
    // Predicated region
    $region14: #{tpu_custom_call.1} parent=1 // pred_check
      _
    $region15: #{tpu_custom_call.1} parent=1 // pred_check_branch
      %44 = sbr.rel (0) target = $region17
    $region16: #{tpu_custom_call.1} parent=1 // pred_region
      %45 = dma.done [#allocation4], 256
    $region17: #{tpu_custom_call.1} parent=1 // pred_fallthru
      _
    %46 = vsyncpa [#allocation3], 1
    %47 = vsyncpa [#allocation4], 1

</llo_original>
